<compile_context>
chip_gen: v5e
topology: v5e:2x2
jax: 0.10.0
libtpu: 0.0.40
codegen_flags: <defaults>
</compile_context>

<pallas_src>
import functools

import jax
import jax.numpy as jnp
from jax.experimental import pallas as pl
from jax.experimental.pallas import tpu as pltpu


def _round_up(n, m):
    return (n + m - 1) // m * m


def _is_tpu_v7x():
    """Best-effort v7x detection (2 TensorCores / 64 MiB VMEM per TC)."""
    try:
        kind = jax.devices()[0].device_kind.lower()
    except Exception:
        return False
    return ("v7" in kind) or ("7x" in kind)


def _pick_block_b(batch, requested, is_v7x):
    """Batch tile: 128-row multiples; full-batch single tile on 1-TC chips when it fits;
    capped + split into >= 2 steps on v7x so both TensorCores get work."""
    blk = max(128, _round_up(int(requested), 128))
    if is_v7x:
        blk = min(blk, 2048)           # 64 MiB physical / 32 MiB scoped VMEM per TC
    if batch <= blk:
        if is_v7x and batch >= 256:
            blk = _round_up(pl.cdiv(batch, 2), 128)   # >= 2 grid steps, 128-aligned
        else:
            blk = batch                # one exact tile: no padding, no extra grid steps
    return blk


def _scdv_mlp_kernel(x_ref, w1_ref, b1_ref, w2_ref, b2_ref, wo_ref, bo_ref, o_ref):
    # layers[1] ReLU on the raw inputs (the first Linear is skipped by forward()).
    # ReLU in x's native dtype: bf16 in -> bf16 relu (bf16 VALU on v6e/v7x, no cast
    # round-trip); f32 in -> f32 relu + a single cast for the MXU (v5e has no bf16 VALU).
    x = jnp.maximum(x_ref[...], 0.0).astype(jnp.bfloat16)
    h1 = jnp.dot(x, w1_ref[...], preferred_element_type=jnp.float32)
    h1 = jnp.maximum(h1 + b1_ref[...], 0.0)                       # f32 bias + ReLU
    h2 = jnp.dot(h1.astype(jnp.bfloat16), w2_ref[...], preferred_element_type=jnp.float32)
    h2 = jnp.maximum(h2 + b2_ref[...], 0.0)                       # f32 bias + ReLU
    # Output Linear (H2 -> 1) on the MXU: Wo zero-padded to 128 lanes, keep column 0.
    # Replaces the VPU-mul + 64-lane XLU reduce; the MXU is otherwise ~1% utilized.
    y = jnp.dot(h2.astype(jnp.bfloat16), wo_ref[...], preferred_element_type=jnp.float32)
    o_ref[...] = (y[:, 0:1] + bo_ref[0]).astype(o_ref.dtype)


@functools.partial(jax.jit, static_argnames=("block_b",))
def _scdv_mlp_pallas(x, w1, b1, w2, b2, wo, bo, *, block_b):
    B, F0 = x.shape
    H1 = w1.shape[1]
    H2 = w2.shape[1]
    assert w1.shape[0] == F0, (
        "forward() skips the first Linear: inputs must have hidden_dims[0] features")
    assert w2.shape[0] == H1 and wo.shape[0] == H2 and wo.shape[1] == 1

    # Small resident operands: cast / reshape here (tiny vs. the x stream).
    w1_bf = w1.astype(jnp.bfloat16)
    w2_bf = w2.astype(jnp.bfloat16)
    wo_bf = jnp.pad(wo.astype(jnp.bfloat16), ((0, 0), (0, 127)))   # (H2, 128), col 0 real
    b1_f32 = b1.reshape(1, H1).astype(jnp.float32)
    b2_f32 = b2.reshape(1, H2).astype(jnp.float32)
    bo_f32 = bo.reshape(-1)[:1].astype(jnp.float32)                # (1,) scalar for SMEM

    grid = (pl.cdiv(B, block_b),)
    cost = pl.CostEstimate(
        flops=2 * B * (F0 * H1 + H1 * H2 + H2),
        transcendentals=0,
        bytes_accessed=(B * F0 * x.dtype.itemsize
                        + (F0 * H1 + H1 * H2 + H2 * 128) * 2
                        + (H1 + H2 + 1) * 4
                        + B * 4))

    return pl.pallas_call(
        _scdv_mlp_kernel,
        out_shape=jax.ShapeDtypeStruct((B, 1), jnp.float32),
        grid_spec=pltpu.PrefetchScalarGridSpec(
            num_scalar_prefetch=0,
            grid=grid,
            in_specs=[
                pl.BlockSpec((block_b, F0), lambda i: (i, 0)),      # x tile, native dtype
                pl.BlockSpec((F0, H1), lambda i: (0, 0)),           # W1 (resident bf16)
                pl.BlockSpec((1, H1), lambda i: (0, 0)),            # b1 (f32)
                pl.BlockSpec((H1, H2), lambda i: (0, 0)),           # W2 (resident bf16)
                pl.BlockSpec((1, H2), lambda i: (0, 0)),            # b2 (f32)
                pl.BlockSpec((H2, 128), lambda i: (0, 0)),          # Wo padded to 128 lanes
                pl.BlockSpec(memory_space=pltpu.MemorySpace.SMEM),  # bo scalar
            ],
            out_specs=pl.BlockSpec((block_b, 1), lambda i: (i, 0)),
        ),
        compiler_params=pltpu.CompilerParams(
            dimension_semantics=("parallel",),
            vmem_limit_bytes=32 * 1024 * 1024),
        cost_estimate=cost,
    )(x, w1_bf, b1_f32, w2_bf, b2_f32, wo_bf, bo_f32)


def scdv_mlp_forward(x, w1, b1, w2, b2, wo, bo, *, block_b=4096):
    """SCDVMLP forward.  x: (B, hidden_dims[0]) in f32 or bf16.

    Feed bf16 activations if the producer can store them: x is ~97% of the HBM
    bytes, so bf16 storage roughly halves the mem-bound roofline.
    """
    blk = _pick_block_b(x.shape[0], block_b, _is_tpu_v7x())
    return _scdv_mlp_pallas(x, w1, b1, w2, b2, wo, bo, block_b=blk)


def make_params(key, input_size, hidden_dims=(256, 64, 64)):
    """Deterministic synthetic parameters matching SCDVMLP.__init__ shapes.

    The first Linear (input_size -> hidden_dims[0]) exists in __init__ but is never
    applied by forward(), so only the used parameters are materialized.  Weights are
    stored (in_features, out_features); biases are (1, out) / (1,).
    """
    k1, k2, k3, k4, k5, k6 = jax.random.split(key, 6)
    h0, h1, h2 = hidden_dims
    w1 = jax.random.normal(k1, (h0, h1), jnp.float32) * (1.0 / jnp.sqrt(h0))
    b1 = jax.random.normal(k2, (1, h1), jnp.float32) * 0.01
    w2 = jax.random.normal(k3, (h1, h2), jnp.float32) * (1.0 / jnp.sqrt(h1))
    b2 = jax.random.normal(k4, (1, h2), jnp.float32) * 0.01
    wo = jax.random.normal(k5, (h2, 1), jnp.float32) * (1.0 / jnp.sqrt(h2))
    bo = jax.random.normal(k6, (1,), jnp.float32) * 0.01
    return w1, b1, w2, b2, wo, bo


def reference_forward_f32(x, w1, b1, w2, b2, wo, bo):
    """Pure f32 reference of the module's forward (eval mode, first Linear skipped)."""
    h = jnp.maximum(x.astype(jnp.float32), 0.0)
    h = jnp.maximum(h @ w1 + b1, 0.0)
    h = jnp.maximum(h @ w2 + b2, 0.0)
    return h @ wo + bo


def reference_forward_bf16(x, w1, b1, w2, b2, wo, bo):
    """Pure-JAX reference mirroring the kernel's bf16-MXU / f32-accumulation path."""
    h = jnp.maximum(x, 0.0).astype(jnp.bfloat16)
    h1 = jnp.dot(h, w1.astype(jnp.bfloat16), preferred_element_type=jnp.float32)
    h1 = jnp.maximum(h1 + b1, 0.0)
    h2 = jnp.dot(h1.astype(jnp.bfloat16), w2.astype(jnp.bfloat16),
                 preferred_element_type=jnp.float32)
    h2 = jnp.maximum(h2 + b2, 0.0)
    y = jnp.dot(h2.astype(jnp.bfloat16), wo.astype(jnp.bfloat16),
                preferred_element_type=jnp.float32)
    return y + bo


if __name__ == "__main__":
    key = jax.random.PRNGKey(0)
    kx1, kx2, kp = jax.random.split(key, 3)

    hidden_dims = (256, 64, 64)      # module defaults
    input_size = hidden_dims[0]      # forward() skips the first Linear -> inputs must be 256-wide
    params = make_params(kp, input_size, hidden_dims)

    # Case 1: small f32 batch -> single full-batch tile (no padding, no extra grid steps).
    B1 = 16
    x1 = jax.random.normal(kx1, (B1, input_size), jnp.float32)
    out1 = jax.block_until_ready(scdv_mlp_forward(x1, *params))
    assert out1.shape == (B1, 1)
    assert jnp.allclose(out1, reference_forward_bf16(x1, *params), atol=2e-3, rtol=2e-3), \
        "mismatch vs bf16-emulating reference (f32 input)"
    assert jnp.allclose(out1, reference_forward_f32(x1, *params), atol=1e-1, rtol=1e-1), \
        "mismatch vs f32 reference"

    # Case 2: bf16 activations + a batch that does not divide the tile -> exercises the
    # cdiv grid with a masked ragged last tile and the bf16 in-kernel ReLU fast path.
    B2 = 300
    x2 = jax.random.normal(kx2, (B2, input_size), jnp.float32).astype(jnp.bfloat16)
    out2 = jax.block_until_ready(scdv_mlp_forward(x2, *params, block_b=128))
    assert out2.shape == (B2, 1)
    assert jnp.allclose(out2, reference_forward_bf16(x2, *params), atol=2e-3, rtol=2e-3), \
        "mismatch vs bf16-emulating reference (bf16 input, ragged grid)"

    print("KERNEL_OK")
</pallas_src>

<mosaic_0001>
module attributes {stable_mosaic.version = 11 : i64} {
  func.func @_scdv_mlp_kernel(%arg0: i32, %arg1: memref<16x256xf32, #tpu.memory_space<vmem>>, %arg2: memref<256x64xbf16, #tpu.memory_space<vmem>>, %arg3: memref<1x64xf32, #tpu.memory_space<vmem>>, %arg4: memref<64x64xbf16, #tpu.memory_space<vmem>>, %arg5: memref<1x64xf32, #tpu.memory_space<vmem>>, %arg6: memref<64x128xbf16, #tpu.memory_space<vmem>>, %arg7: memref<1xf32, #tpu.memory_space<smem>>, %arg8: memref<16x1xf32, #tpu.memory_space<vmem>>) attributes {dimension_semantics = [#tpu.dimension_semantics<parallel>], iteration_bounds = array<i64: 1>, scalar_prefetch = 0 : i64, scratch_operands = 0 : i64, tpu.core_type = #tpu.core_type<tc>, window_params = [{transform_indices = @transform_0, window_bounds = array<i64: 16, 256>}, {pipeline_mode = #tpu.pipeline_mode<synchronous>, transform_indices = @transform_1, window_bounds = array<i64: 256, 64>}, {pipeline_mode = #tpu.pipeline_mode<synchronous>, transform_indices = @transform_2, window_bounds = array<i64: 1, 64>}, {pipeline_mode = #tpu.pipeline_mode<synchronous>, transform_indices = @transform_3, window_bounds = array<i64: 64, 64>}, {pipeline_mode = #tpu.pipeline_mode<synchronous>, transform_indices = @transform_4, window_bounds = array<i64: 1, 64>}, {pipeline_mode = #tpu.pipeline_mode<synchronous>, transform_indices = @transform_5, window_bounds = array<i64: 64, 128>}, {transform_indices = @transform_6, window_bounds = array<i64: 1>}, {transform_indices = @transform_7, window_bounds = array<i64: 16, 1>}]} {
    %c0 = arith.constant 0 : index
    %c0_0 = arith.constant 0 : index
    %0 = vector.load %arg1[%c0, %c0_0] : memref<16x256xf32, #tpu.memory_space<vmem>>, vector<16x256xf32>
    %cst = arith.constant 0.000000e+00 : f32
    %1 = vector.broadcast %cst : f32 to vector<16x256xf32>
    %2 = arith.maximumf %0, %1 : vector<16x256xf32>
    %3 = arith.truncf %2 : vector<16x256xf32> to vector<16x256xbf16>
    %c0_1 = arith.constant 0 : index
    %c0_2 = arith.constant 0 : index
    %4 = vector.load %arg2[%c0_1, %c0_2] : memref<256x64xbf16, #tpu.memory_space<vmem>>, vector<256x64xbf16>
    %cst_3 = arith.constant dense<0.000000e+00> : vector<16x64xf32>
    %5 = tpu.matmul %3, %4, %cst_3 {dimension_numbers = #tpu.dot_dimension_numbers<[1], [0], [0], [1], [0, 0, 1, 1], [], []>} : vector<16x256xbf16>, vector<256x64xbf16>, vector<16x64xf32> -> vector<16x64xf32>
    %c0_4 = arith.constant 0 : index
    %c0_5 = arith.constant 0 : index
    %6 = vector.load %arg3[%c0_4, %c0_5] : memref<1x64xf32, #tpu.memory_space<vmem>>, vector<1x64xf32>
    %7 = vector.broadcast %6 : vector<1x64xf32> to vector<16x64xf32>
    %8 = arith.addf %5, %7 : vector<16x64xf32>
    %cst_6 = arith.constant 0.000000e+00 : f32
    %9 = vector.broadcast %cst_6 : f32 to vector<16x64xf32>
    %10 = arith.maximumf %8, %9 : vector<16x64xf32>
    %11 = arith.truncf %10 : vector<16x64xf32> to vector<16x64xbf16>
    %c0_7 = arith.constant 0 : index
    %c0_8 = arith.constant 0 : index
    %12 = vector.load %arg4[%c0_7, %c0_8] : memref<64x64xbf16, #tpu.memory_space<vmem>>, vector<64x64xbf16>
    %cst_9 = arith.constant dense<0.000000e+00> : vector<16x64xf32>
    %13 = tpu.matmul %11, %12, %cst_9 {dimension_numbers = #tpu.dot_dimension_numbers<[1], [0], [0], [1], [0, 0, 1, 1], [], []>} : vector<16x64xbf16>, vector<64x64xbf16>, vector<16x64xf32> -> vector<16x64xf32>
    %c0_10 = arith.constant 0 : index
    %c0_11 = arith.constant 0 : index
    %14 = vector.load %arg5[%c0_10, %c0_11] : memref<1x64xf32, #tpu.memory_space<vmem>>, vector<1x64xf32>
    %15 = vector.broadcast %14 : vector<1x64xf32> to vector<16x64xf32>
    %16 = arith.addf %13, %15 : vector<16x64xf32>
    %cst_12 = arith.constant 0.000000e+00 : f32
    %17 = vector.broadcast %cst_12 : f32 to vector<16x64xf32>
    %18 = arith.maximumf %16, %17 : vector<16x64xf32>
    %19 = arith.truncf %18 : vector<16x64xf32> to vector<16x64xbf16>
    %c0_13 = arith.constant 0 : index
    %c0_14 = arith.constant 0 : index
    %20 = vector.load %arg6[%c0_13, %c0_14] : memref<64x128xbf16, #tpu.memory_space<vmem>>, vector<64x128xbf16>
    %cst_15 = arith.constant dense<0.000000e+00> : vector<16x128xf32>
    %21 = tpu.matmul %19, %20, %cst_15 {dimension_numbers = #tpu.dot_dimension_numbers<[1], [0], [0], [1], [0, 0, 1, 1], [], []>} : vector<16x64xbf16>, vector<64x128xbf16>, vector<16x128xf32> -> vector<16x128xf32>
    %22 = vector.extract_strided_slice %21 {offsets = [0, 0], sizes = [16, 1], strides = [1, 1]} : vector<16x128xf32> to vector<16x1xf32>
    %c0_16 = arith.constant 0 : index
    %23 = memref.load %arg7[%c0_16] : memref<1xf32, #tpu.memory_space<smem>>
    %24 = vector.broadcast %23 : f32 to vector<16x1xf32>
    %25 = arith.addf %22, %24 : vector<16x1xf32>
    %c0_17 = arith.constant 0 : index
    %c0_18 = arith.constant 0 : index
    %26 = vector.load %arg8[%c0_17, %c0_18] : memref<16x1xf32, #tpu.memory_space<vmem>>, vector<16x1xf32>
    tpu.vector_store %arg8[%c0_17, %c0_18], %25 {strides = array<i32>} : memref<16x1xf32, #tpu.memory_space<vmem>>, vector<16x1xf32>,
    return
  }
  func.func @transform_0(%arg0: i32) -> (i32, i32) {
    %c0_i32 = arith.constant 0 : i32
    %c0_i32_0 = arith.constant 0 : i32
    return %arg0, %c0_i32 : i32, i32
  }
  func.func @transform_1(%arg0: i32) -> (i32, i32) {
    %c0_i32 = arith.constant 0 : i32
    %c0_i32_0 = arith.constant 0 : i32
    %c0_i32_1 = arith.constant 0 : i32
    return %c0_i32, %c0_i32_0 : i32, i32
  }
  func.func @transform_2(%arg0: i32) -> (i32, i32) {
    %c0_i32 = arith.constant 0 : i32
    %c0_i32_0 = arith.constant 0 : i32
    %c0_i32_1 = arith.constant 0 : i32
    return %c0_i32, %c0_i32_0 : i32, i32
  }
  func.func @transform_3(%arg0: i32) -> (i32, i32) {
    %c0_i32 = arith.constant 0 : i32
    %c0_i32_0 = arith.constant 0 : i32
    %c0_i32_1 = arith.constant 0 : i32
    return %c0_i32, %c0_i32_0 : i32, i32
  }
  func.func @transform_4(%arg0: i32) -> (i32, i32) {
    %c0_i32 = arith.constant 0 : i32
    %c0_i32_0 = arith.constant 0 : i32
    %c0_i32_1 = arith.constant 0 : i32
    return %c0_i32, %c0_i32_0 : i32, i32
  }
  func.func @transform_5(%arg0: i32) -> (i32, i32) {
    %c0_i32 = arith.constant 0 : i32
    %c0_i32_0 = arith.constant 0 : i32
    %c0_i32_1 = arith.constant 0 : i32
    return %c0_i32, %c0_i32_0 : i32, i32
  }
  func.func @transform_6(%arg0: i32) -> i32 {
    %c0_i32 = arith.constant 0 : i32
    %c0_i32_0 = arith.constant 0 : i32
    return %c0_i32 : i32
  }
  func.func @transform_7(%arg0: i32) -> (i32, i32) {
    %c0_i32 = arith.constant 0 : i32
    %c0_i32_0 = arith.constant 0 : i32
    return %arg0, %c0_i32 : i32, i32
  }
}

</mosaic_0001>

<llo_original>
// kernel: _scdv_mlp_pallas.1
$region0: #{_scdv_mlp_pallas.1}
  #allocation0 [shape = 'u32[]', space=smem, size = 0x4, offset = 0x4, fixed_abs, tag = 'smem constant byte address 0x4 - core index']
  #allocation1 [shape = 'u32[72,128]{1,0:T(1,128)}', space=vmem, size = 0x9000, scoped, tag = 'internal scratch']
  #allocation2 [shape = 'f32[1]{0:T(128)S(6)}', space=smem, size = 0x200, scoped, tag = 'scoped memory for _scdv_mlp_pallas.1']
  %s0 = inlined_call_operand.vmem [shape: f32[16,256], index: 0, kind: input, shape index: {}]
  %s1 = inlined_call_operand.vmem [shape: bf16[256,64], index: 1, kind: input, shape index: {}]
  %s2 = inlined_call_operand.vmem [shape: f32[1,64], index: 2, kind: input, shape index: {}]
  %s3 = inlined_call_operand.vmem [shape: bf16[64,64], index: 3, kind: input, shape index: {}]
  %s4 = inlined_call_operand.vmem [shape: f32[1,64], index: 4, kind: input, shape index: {}]
  %s5 = inlined_call_operand.vmem [shape: bf16[64,128], index: 5, kind: input, shape index: {}]
  %s6 = inlined_call_operand.<no memory space> [shape: f32[1], index: 6, kind: input, shape index: {}]
  %s7 = inlined_call_operand.vmem [shape: f32[16,1], index: 7, kind: output, shape index: {}]
  %s8 = sld [smem:[#allocation0]]
  $region38: #{_scdv_mlp_pallas.1} parent=0
    _
  %s10 = ssub.s32 1, %s8
  %s11 = scalar_select 0, %s10, %s8
  %12 = sst [smem:[#allocation2]] %s6
  // Predicated region
  $region2: #{_scdv_mlp_pallas.1} parent=0 // pred_check
    _
  $region3: #{_scdv_mlp_pallas.1} parent=0 // pred_check_branch
    %14 = sbr.rel (0) target = $region5
  $region4: #{_scdv_mlp_pallas.1} parent=0 // pred_region
    _
  $region5: #{_scdv_mlp_pallas.1} parent=0 // pred_fallthru
    _
  // Predicated region
  $region6: #{_scdv_mlp_pallas.1} parent=0 // pred_check
    _
  $region7: #{_scdv_mlp_pallas.1} parent=0 // pred_check_branch
    %16 = sbr.rel (0) target = $region9
  $region8: #{_scdv_mlp_pallas.1} parent=0 // pred_region
    _
  $region9: #{_scdv_mlp_pallas.1} parent=0 // pred_fallthru
    _
  // Predicated region
  $region10: #{_scdv_mlp_pallas.1} parent=0 // pred_check
    _
  $region11: #{_scdv_mlp_pallas.1} parent=0 // pred_check_branch
    %18 = sbr.rel (0) target = $region13
  $region12: #{_scdv_mlp_pallas.1} parent=0 // pred_region
    _
  $region13: #{_scdv_mlp_pallas.1} parent=0 // pred_fallthru
    _
  // Predicated region
  $region14: #{_scdv_mlp_pallas.1} parent=0 // pred_check
    _
  $region15: #{_scdv_mlp_pallas.1} parent=0 // pred_check_branch
    %20 = sbr.rel (0) target = $region17
  $region16: #{_scdv_mlp_pallas.1} parent=0 // pred_region
    _
  $region17: #{_scdv_mlp_pallas.1} parent=0 // pred_fallthru
    _
  // Predicated region
  $region18: #{_scdv_mlp_pallas.1} parent=0 // pred_check
    _
  $region19: #{_scdv_mlp_pallas.1} parent=0 // pred_check_branch
    %22 = sbr.rel (0) target = $region21
  $region20: #{_scdv_mlp_pallas.1} parent=0 // pred_region
    _
  $region21: #{_scdv_mlp_pallas.1} parent=0 // pred_fallthru
    _
  // Predicated region
  $region22: #{_scdv_mlp_pallas.1} parent=0 // pred_check
    _
  $region23: #{_scdv_mlp_pallas.1} parent=0 // pred_check_branch
    %24 = sbr.rel (0) target = $region25
  $region24: #{_scdv_mlp_pallas.1} parent=0 // pred_region
    _
  $region25: #{_scdv_mlp_pallas.1} parent=0 // pred_fallthru
    _
  // Predicated region
  $region26: #{_scdv_mlp_pallas.1} parent=0 // pred_check
    _
  $region27: #{_scdv_mlp_pallas.1} parent=0 // pred_check_branch
    %26 = sbr.rel (0) target = $region29
  $region28: #{_scdv_mlp_pallas.1} parent=0 // pred_region
    _
  $region29: #{_scdv_mlp_pallas.1} parent=0 // pred_fallthru
    _
  %v28 = vld [vmem:[%s0] sm:$0xff]
  %v29 = vld [vmem:[%s0 + $0x8] sm:$0xff]
  %v30 = vld [vmem:[%s0 + $0x10] sm:$0xff]
  %v31 = vld [vmem:[%s0 + $0x18] sm:$0xff]
  %v32 = vmax.f32 %v28, 0.0
  %v33 = vmax.f32 %v29, 0.0
  %v34 = vmax.f32 %v30, 0.0
  %v35 = vmax.f32 %v31, 0.0
  %v36 = vpack.c.bf16 %v34, %v32
  %v37 = vpack.c.bf16 %v35, %v33
  %v38 = vld [vmem:[%s1] sm:$0xf]
  %v39 = vld [vmem:[%s1 + $0x4] sm:$0xf]
  %v40 = vld [vmem:[%s1 + $0x8] sm:$0xf]
  %v41 = vld [vmem:[%s1 + $0xc] sm:$0xf]
  %v42 = vld [vmem:[%s1 + $0x10] sm:$0xf]
  %v43 = vld [vmem:[%s1 + $0x14] sm:$0xf]
  %v44 = vld [vmem:[%s1 + $0x18] sm:$0xf]
  %v45 = vld [vmem:[%s1 + $0x1c] sm:$0xf]
  %v46 = vld [vmem:[%s1 + $0x20] sm:$0xf]
  %v47 = vld [vmem:[%s1 + $0x24] sm:$0xf]
  %v48 = vld [vmem:[%s1 + $0x28] sm:$0xf]
  %v49 = vld [vmem:[%s1 + $0x2c] sm:$0xf]
  %v50 = vld [vmem:[%s1 + $0x30] sm:$0xf]
  %v51 = vld [vmem:[%s1 + $0x34] sm:$0xf]
  %v52 = vld [vmem:[%s1 + $0x38] sm:$0xf]
  %v53 = vld [vmem:[%s1 + $0x3c] sm:$0xf]
  %v54 = vld [vmem:[%s1 + $0x40] sm:$0xf]
  %v55 = vld [vmem:[%s1 + $0x44] sm:$0xf]
  %v56 = vld [vmem:[%s1 + $0x48] sm:$0xf]
  %v57 = vld [vmem:[%s1 + $0x4c] sm:$0xf]
  %v58 = vld [vmem:[%s1 + $0x50] sm:$0xf]
  %v59 = vld [vmem:[%s1 + $0x54] sm:$0xf]
  %v60 = vld [vmem:[%s1 + $0x58] sm:$0xf]
  %v61 = vld [vmem:[%s1 + $0x5c] sm:$0xf]
  %v62 = vld [vmem:[%s1 + $0x60] sm:$0xf]
  %v63 = vld [vmem:[%s1 + $0x64] sm:$0xf]
  %v64 = vld [vmem:[%s1 + $0x68] sm:$0xf]
  %v65 = vld [vmem:[%s1 + $0x6c] sm:$0xf]
  %v66 = vld [vmem:[%s1 + $0x70] sm:$0xf]
  %v67 = vld [vmem:[%s1 + $0x74] sm:$0xf]
  %v68 = vld [vmem:[%s1 + $0x78] sm:$0xf]
  %v69 = vld [vmem:[%s1 + $0x7c] sm:$0xf]
  %v70 = vld [vmem:[%s2] sm:$0x1]
  %v72 = vperm.slane %v70, 0
  %v106 = vunpack.c.l.b16 %v38
  %v107 = vunpack.c.l.b16 %v39
  %v108 = vunpack.c.l.b16 %v40
  %v109 = vunpack.c.l.b16 %v41
  %v110 = vunpack.c.l.b16 %v42
  %v111 = vunpack.c.l.b16 %v43
  %v112 = vunpack.c.l.b16 %v44
  %v113 = vunpack.c.l.b16 %v45
  %v114 = vunpack.c.l.b16 %v46
  %v115 = vunpack.c.l.b16 %v47
  %v116 = vunpack.c.l.b16 %v48
  %v117 = vunpack.c.l.b16 %v49
  %v118 = vunpack.c.l.b16 %v50
  %v119 = vunpack.c.l.b16 %v51
  %v120 = vunpack.c.l.b16 %v52
  %v121 = vunpack.c.l.b16 %v53
  %v122 = vunpack.c.l.b16 %v54
  %v123 = vunpack.c.l.b16 %v55
  %v124 = vunpack.c.l.b16 %v56
  %v125 = vunpack.c.l.b16 %v57
  %v126 = vunpack.c.l.b16 %v58
  %v127 = vunpack.c.l.b16 %v59
  %v128 = vunpack.c.l.b16 %v60
  %v129 = vunpack.c.l.b16 %v61
  %v130 = vunpack.c.l.b16 %v62
  %v131 = vunpack.c.l.b16 %v63
  %v132 = vunpack.c.l.b16 %v64
  %v133 = vunpack.c.l.b16 %v65
  %v134 = vunpack.c.l.b16 %v66
  %v135 = vunpack.c.l.b16 %v67
  %v136 = vunpack.c.l.b16 %v68
  %v137 = vunpack.c.l.b16 %v69
  %v138 = vpack.c.b16 %v107, %v106
  %v139 = vpack.c.b16 %v109, %v108
  %v140 = vpack.c.b16 %v111, %v110
  %v141 = vpack.c.b16 %v113, %v112
  %v142 = vpack.c.b16 %v115, %v114
  %v143 = vpack.c.b16 %v117, %v116
  %v144 = vpack.c.b16 %v119, %v118
  %v145 = vpack.c.b16 %v121, %v120
  %v146 = vpack.c.b16 %v123, %v122
  %v147 = vpack.c.b16 %v125, %v124
  %v148 = vpack.c.b16 %v127, %v126
  %v149 = vpack.c.b16 %v129, %v128
  %v150 = vpack.c.b16 %v131, %v130
  %v151 = vpack.c.b16 %v133, %v132
  %v152 = vpack.c.b16 %v135, %v134
  %v153 = vpack.c.b16 %v137, %v136
  %170 = vmatpush.bf16.msra.mxu0 %v145
  %171 = vmatpush.bf16.msra.mxu0 %v144
  %172 = vmatpush.bf16.msra.mxu0 %v143
  %173 = vmatpush.bf16.msra.mxu0 %v142
  %174 = vmatpush.bf16.msra.mxu0 %v141
  %175 = vmatpush.bf16.msra.mxu0 %v140
  %176 = vmatpush.bf16.msra.mxu0 %v139
  %177 = vmatpush.bf16.msra.mxu0 %v138
  %178 = vmatmul.bf16.gmra.mxu0 %v36
  %v179 = vpop.f32.mrf.mxu0
  %v180 = vadd.f32 %v72, %v179
  %v181 = vpop.f32.mrf.mxu0
  %v182 = vadd.f32 %v72, %v181
  %183 = vdwg.mxu0
  %184 = vmatpush.bf16.msra.mxu0 %v153
  %185 = vmatpush.bf16.msra.mxu0 %v152
  %186 = vmatpush.bf16.msra.mxu0 %v151
  %187 = vmatpush.bf16.msra.mxu0 %v150
  %188 = vmatpush.bf16.msra.mxu0 %v149
  %189 = vmatpush.bf16.msra.mxu0 %v148
  %190 = vmatpush.bf16.msra.mxu0 %v147
  %191 = vmatpush.bf16.msra.mxu0 %v146
  %192 = vmatmul.bf16.gmra.mxu0 %v37
  %v193 = vpop.f32.mrf.mxu0
  %v194 = vadd.f32 %v180, %v193
  %v195 = vpop.f32.mrf.mxu0
  %v196 = vadd.f32 %v182, %v195
  %197 = vdwg.mxu0
  %v198 = vmax.f32 %v194, 0.0
  %v199 = vmax.f32 %v196, 0.0
  %v200 = vpack.c.bf16 %v199, %v198
  %v201 = vld [vmem:[%s3] sm:$0xf]
  %v202 = vld [vmem:[%s3 + $0x4] sm:$0xf]
  %v203 = vld [vmem:[%s3 + $0x8] sm:$0xf]
  %v204 = vld [vmem:[%s3 + $0xc] sm:$0xf]
  %v205 = vld [vmem:[%s3 + $0x10] sm:$0xf]
  %v206 = vld [vmem:[%s3 + $0x14] sm:$0xf]
  %v207 = vld [vmem:[%s3 + $0x18] sm:$0xf]
  %v208 = vld [vmem:[%s3 + $0x1c] sm:$0xf]
  %v209 = vld [vmem:[%s4] sm:$0x1]
  %v211 = vperm.slane %v209, 0
  %v221 = vunpack.c.l.b16 %v201
  %v222 = vunpack.c.l.b16 %v202
  %v223 = vunpack.c.l.b16 %v203
  %v224 = vunpack.c.l.b16 %v204
  %v225 = vunpack.c.l.b16 %v205
  %v226 = vunpack.c.l.b16 %v206
  %v227 = vunpack.c.l.b16 %v207
  %v228 = vunpack.c.l.b16 %v208
  %v229 = vpack.c.b16 %v222, %v221
  %v230 = vpack.c.b16 %v224, %v223
  %v231 = vpack.c.b16 %v226, %v225
  %v232 = vpack.c.b16 %v228, %v227
  %vm237 = vcmask 523264
  %v239 = vsel %vm237, %v200, 0
  %241 = vmatpush.bf16.msra.mxu0 0
  %242 = vmatpush.bf16.msra.mxu0 0
  %243 = vmatpush.bf16.msra.mxu0 0
  %244 = vmatpush.bf16.msra.mxu0 0
  %245 = vmatpush.bf16.msra.mxu0 %v232
  %246 = vmatpush.bf16.msra.mxu0 %v231
  %247 = vmatpush.bf16.msra.mxu0 %v230
  %248 = vmatpush.bf16.msra.mxu0 %v229
  %249 = vmatmul.bf16.gmra.mxu0 %v239
  %v250 = vpop.f32.mrf.mxu0
  %v251 = vadd.f32 %v211, %v250
  %v252 = vpop.f32.mrf.mxu0
  %v253 = vadd.f32 %v211, %v252
  %254 = vdwg.mxu0
  %v255 = vmax.f32 %v251, 0.0
  %v256 = vmax.f32 %v253, 0.0
  %v257 = vpack.c.bf16 %v256, %v255
  %v258 = vld [vmem:[%s5] sm:$0xf]
  %v259 = vld [vmem:[%s5 + $0x4] sm:$0xf]
  %v260 = vld [vmem:[%s5 + $0x8] sm:$0xf]
  %v261 = vld [vmem:[%s5 + $0xc] sm:$0xf]
  %v262 = vld [vmem:[%s5 + $0x10] sm:$0xf]
  %v263 = vld [vmem:[%s5 + $0x14] sm:$0xf]
  %v264 = vld [vmem:[%s5 + $0x18] sm:$0xf]
  %v265 = vld [vmem:[%s5 + $0x1c] sm:$0xf]
  %v274 = vunpack.c.l.b16 %v258
  %v275 = vunpack.c.l.b16 %v259
  %v276 = vunpack.c.l.b16 %v260
  %v277 = vunpack.c.l.b16 %v261
  %v278 = vunpack.c.l.b16 %v262
  %v279 = vunpack.c.l.b16 %v263
  %v280 = vunpack.c.l.b16 %v264
  %v281 = vunpack.c.l.b16 %v265
  %v282 = vpack.c.b16 %v275, %v274
  %v283 = vpack.c.b16 %v277, %v276
  %v284 = vpack.c.b16 %v279, %v278
  %v285 = vpack.c.b16 %v281, %v280
  %v291 = vsel %vm237, %v257, 0
  %293 = vmatpush.bf16.msra.mxu0 0
  %294 = vmatpush.bf16.msra.mxu0 0
  %295 = vmatpush.bf16.msra.mxu0 0
  %296 = vmatpush.bf16.msra.mxu0 0
  %297 = vmatpush.bf16.msra.mxu0 %v285
  %298 = vmatpush.bf16.msra.mxu0 %v284
  %299 = vmatpush.bf16.msra.mxu0 %v283
  %300 = vmatpush.bf16.msra.mxu0 %v282
  %301 = vmatmul.bf16.gmra.mxu0 %v291
  %v302 = vpop.f32.mrf.mxu0
  %v303 = vadd.f32 0.0, %v302
  %v304 = vpop.f32.mrf.mxu0
  %v305 = vadd.f32 0.0, %v304
  %306 = vdwg.mxu0
  %s307 = sld [smem:[#allocation2]]
  %v308 = vstv %s307
  %v309 = vadd.f32 %v303, %v308
  %v310 = vadd.f32 %v305, %v308
  %vm311 = vcmask 7168
  %312 = vst.msk [vmem:[%s7] sm:$0xff] %vm311, %v309
  %313 = vst.msk [vmem:[%s7 + $0x8] sm:$0xff] %vm311, %v310
  // Predicated region
  $region30: #{_scdv_mlp_pallas.1} parent=0 // pred_check
    _
  $region31: #{_scdv_mlp_pallas.1} parent=0 // pred_check_branch
    %315 = sbr.rel (0) target = $region33
  $region32: #{_scdv_mlp_pallas.1} parent=0 // pred_region
    _
  $region33: #{_scdv_mlp_pallas.1} parent=0 // pred_fallthru
    _
  // Predicated region
  $region34: #{_scdv_mlp_pallas.1} parent=0 // pred_check
    _
  $region35: #{_scdv_mlp_pallas.1} parent=0 // pred_check_branch
    %317 = sbr.rel (0) target = $region37
  $region36: #{_scdv_mlp_pallas.1} parent=0 // pred_region
    _
  $region37: #{_scdv_mlp_pallas.1} parent=0 // pred_fallthru
    _

</llo_original>
